<compile_context>
chip_gen: v7x
topology: tpu7x:2x2x1
jax: 0.10.0
libtpu: 0.0.40
codegen_flags: <defaults>
</compile_context>

<pallas_src>
import functools

import jax
import jax.numpy as jnp
from jax.experimental import pallas as pl
from jax.experimental.pallas import tpu as pltpu

BN_EPS = 1e-5
LANE = 128


def _round_up(v, m):
    return (v + m - 1) // m * m


def _msg_agg_kernel(
    # scalar prefetch (SMEM)
    lo_ref,         # (NI,) int32  first edge block touching node block i
    hi_ref,         # (NI,) int32  last  edge block touching node block i
    # inputs (VMEM tiles)
    x_ref,          # (TM, Cip)    bf16 node features, this node block
    msg_ref,        # (TE, Cip)    bf16 precomputed per-edge messages (dst-sorted)
    dst_ref,        # (1, TE)      int32 destination node ids (dst-sorted)
    w_rel_ref,      # (Cip, Cop)   bf16 GraphConv lin_rel weight (transposed)
    b_rel_ref,      # (1, Cop)     f32  GraphConv lin_rel bias
    w_rootres_ref,  # (Cip, 2*Cop) bf16 [lin_root | res_lin] weights fused (transposed)
    # outputs
    h_ref,          # (TM, Cop)    bf16 pre-BN (post-ReLU) activations
    res_ref,        # (TM, Cop)    bf16 residual projection res_lin(x)
    stats_ref,      # (8, Cop)     f32  row0 = sum(h), row1 = sum(h*h) over valid rows
    # scratch
    agg_ref,        # (TM, Cip)    f32 accumulator of scattered messages
    *, tm, n_real, cop,
):
    i = pl.program_id(0)            # node-block index  ("parallel")
    k = pl.program_id(1)            # edge-block index  ("arbitrary" / reduction)
    nk = pl.num_programs(1)
    row0 = i * tm

    @pl.when(k == 0)
    def _():
        agg_ref[...] = jnp.zeros_like(agg_ref)

    # Edge blocks outside [lo, hi] cannot touch this node block (edges are dst-sorted).
    # Their DMAs are already elided by the clamped index_maps; skip the compute too.
    overlap = jnp.logical_and(k >= lo_ref[i], k <= hi_ref[i])

    @pl.when(overlap)
    def _():
        # scatter-add over destinations: build the (TM, TE) 0/1 mask on the fly in bf16
        # (exact for 0/1) from the int32 dst row and contract on the MXU into f32 acc.
        node_ids = row0 + jax.lax.broadcasted_iota(jnp.int32, (tm, 1), 0)
        sc = (node_ids == dst_ref[...]).astype(jnp.bfloat16)          # (TM, TE)
        agg_ref[...] += jnp.dot(sc, msg_ref[...],
                                preferred_element_type=jnp.float32)

    @pl.when(k == nk - 1)
    def _():
        x = x_ref[...]
        # fused root + residual projection: one (TM, Cip) @ (Cip, 2*Cop) bf16 matmul
        xproj = jnp.dot(x, w_rootres_ref[...], preferred_element_type=jnp.float32)
        h = (jnp.dot(agg_ref[...].astype(jnp.bfloat16), w_rel_ref[...],
                     preferred_element_type=jnp.float32)
             + b_rel_ref[...] + xproj[:, :cop])
        h = jnp.maximum(h, 0.0)                                       # ReLU
        h_ref[...] = h.astype(h_ref.dtype)
        res_ref[...] = xproj[:, cop:].astype(res_ref.dtype)
        # BatchNorm partial statistics in f32 (mask padded node rows); rows 2..7 of the
        # stats tile are never read by the wrapper.
        rows = row0 + jax.lax.broadcasted_iota(jnp.int32, (tm, 1), 0)
        hm = jnp.where(rows < n_real, h, 0.0)
        stats_ref[0:1, :] = jnp.sum(hm, axis=0, keepdims=True)
        stats_ref[1:2, :] = jnp.sum(hm * hm, axis=0, keepdims=True)


def _bn_res_kernel(h_ref, res_ref, scale_ref, shift_ref, out_ref):
    # out = (h - mean) * rsqrt(var + eps) * gamma + beta + res,
    # folded to h*scale + shift + res; h/res streamed in bf16, math in f32.
    h = h_ref[...].astype(jnp.float32)
    r = res_ref[...].astype(jnp.float32)
    out_ref[...] = h * scale_ref[...] + shift_ref[...] + r


def res_graph_module(x, edge_index, edge_attr, params, *, tm=256, te=256):
    """x: (N, Cin) f32, edge_index: (2, E) int32, edge_attr: (E, Ce) f32."""
    n, cin = x.shape
    e, ce = edge_attr.shape
    cout = params["w_rel"].shape[1]

    # lane-dense channel padding (128)
    cip = _round_up(cin, LANE)
    cop = _round_up(cout, LANE)

    # node tiling: keep >= 2 node blocks when possible so the "parallel" axis can feed
    # both v7x TensorCores (v5e/v6e are unaffected).
    rows8 = _round_up(n, 8)
    tm = min(tm, rows8)
    if rows8 >= 16 and rows8 // tm < 2:
        tm = _round_up((rows8 + 1) // 2, 8)
    n_pad = _round_up(n, tm)
    ni = n_pad // tm

    # edge tiling (TE kept modest so the on-the-fly (TM, TE) mask stays cheap)
    # TODO(synk): sweep te (and pl.Buffered(3) on the msg/dst specs) per chip once the
    # redundant edge DMA is gone; larger te helps v6e/v5e, smaller te protects v7x VMEM.
    te = min(te, _round_up(e, LANE))
    e_pad = _round_up(e, te)
    nk = e_pad // te

    # -------- wrapper glue: O(E log E) sort + O(E*Cin) gather / message precompute ----
    # TODO(synk): for static graphs, hoist argsort/gather/searchsorted out of the
    # per-call path (they are a one-time cost per graph topology).
    src, dst = edge_index[0].astype(jnp.int32), edge_index[1].astype(jnp.int32)
    perm = jnp.argsort(dst)                       # dst-sorted -> contiguous dst segments
    dst_s = dst[perm]
    dst_p = jnp.pad(dst_s, (0, e_pad - e), mode="edge")   # padded edges carry zero msg
    dst2d = dst_p[None, :]                                # (1, E_pad) int32

    # per-node-block contiguous edge-block range [lo, hi] (drives DMA + compute skipping)
    blk_first = jnp.arange(ni, dtype=jnp.int32) * tm
    starts = jnp.searchsorted(dst_p, blk_first)
    ends = jnp.searchsorted(dst_p, blk_first + tm)
    lo = jnp.clip(starts // te, 0, nk - 1).astype(jnp.int32)
    hi = jnp.clip((ends - 1) // te, 0, nk - 1).astype(jnp.int32)
    hi = jnp.maximum(hi, lo)

    # msg = edge_lin(edge_attr) * x[src], computed once at Cin width, streamed as bf16
    msg = (edge_attr[perm] @ params["w_edge"]) * x[src[perm]]          # (E, Cin) f32
    msg_p = jnp.zeros((e_pad, cip), jnp.bfloat16).at[:e, :cin].set(
        msg.astype(jnp.bfloat16))
    x_p = jnp.zeros((n_pad, cip), jnp.bfloat16).at[:n, :cin].set(
        x.astype(jnp.bfloat16))

    # lane-padded parameters ([fan_in, fan_out]); MXU operands bf16, bias/BN params f32
    w_rel = jnp.zeros((cip, cop), jnp.bfloat16).at[:cin, :cout].set(
        params["w_rel"].astype(jnp.bfloat16))
    b_rel = jnp.zeros((1, cop), jnp.float32).at[:, :cout].set(params["b_rel"])
    w_root = jnp.zeros((cip, cop), jnp.bfloat16).at[:cin, :cout].set(
        params["w_root"].astype(jnp.bfloat16))
    w_res = jnp.zeros((cip, cop), jnp.bfloat16).at[:cin, :cout].set(
        params["w_res"].astype(jnp.bfloat16))
    w_rootres = jnp.concatenate([w_root, w_res], axis=1)               # (Cip, 2*Cop)
    gamma = jnp.ones((1, cop), jnp.float32).at[:, :cout].set(params["gamma"])
    beta = jnp.zeros((1, cop), jnp.float32).at[:, :cout].set(params["beta"])

    kernel1 = functools.partial(_msg_agg_kernel, tm=tm, n_real=n, cop=cop)

    def _edge_blk(i, k, lo_ref, hi_ref):
        # Clamp the edge-block index into this node block's live range: out-of-range
        # grid steps repeat the previous block index, so Pallas elides the DMA.
        return jnp.minimum(jnp.maximum(k, lo_ref[i]), hi_ref[i])

    h_pre, res, stats = pl.pallas_call(
        kernel1,
        out_shape=(
            jax.ShapeDtypeStruct((n_pad, cop), jnp.bfloat16),
            jax.ShapeDtypeStruct((n_pad, cop), jnp.bfloat16),
            jax.ShapeDtypeStruct((ni * 8, cop), jnp.float32),
        ),
        grid_spec=pltpu.PrefetchScalarGridSpec(
            num_scalar_prefetch=2,
            grid=(ni, nk),
            in_specs=[
                pl.BlockSpec((tm, cip), lambda i, k, lo, hi: (i, 0)),            # x
                pl.BlockSpec((te, cip),
                             lambda i, k, lo, hi: (_edge_blk(i, k, lo, hi), 0)),  # msg
                pl.BlockSpec((1, te),
                             lambda i, k, lo, hi: (0, _edge_blk(i, k, lo, hi))),  # dst
                pl.BlockSpec((cip, cop), lambda i, k, lo, hi: (0, 0)),           # w_rel
                pl.BlockSpec((1, cop), lambda i, k, lo, hi: (0, 0)),             # b_rel
                pl.BlockSpec((cip, 2 * cop), lambda i, k, lo, hi: (0, 0)),  # w_root|w_res
            ],
            out_specs=(
                pl.BlockSpec((tm, cop), lambda i, k, lo, hi: (i, 0)),            # h_pre
                pl.BlockSpec((tm, cop), lambda i, k, lo, hi: (i, 0)),            # res
                pl.BlockSpec((8, cop), lambda i, k, lo, hi: (i, 0)),             # stats
            ),
            scratch_shapes=[pltpu.VMEM((tm, cip), jnp.float32)],
        ),
        compiler_params=pltpu.CompilerParams(
            dimension_semantics=("parallel", "arbitrary"),
            vmem_limit_bytes=48 * 1024 * 1024),
    )(lo, hi, x_p, msg_p, dst2d, w_rel, b_rel, w_rootres)

    # global BatchNorm statistics from per-block partial sums (tiny (NI, Cop) reduction)
    stats = stats.reshape(ni, 8, cop)
    total = jnp.sum(stats[:, 0, :], axis=0)
    total_sq = jnp.sum(stats[:, 1, :], axis=0)
    mean = total / n
    # TODO(synk): switch to centered per-block sums (Welford combine) if channel
    # magnitudes can make E[h^2] - mean^2 cancel catastrophically in f32.
    var = jnp.maximum(total_sq / n - mean * mean, 0.0)    # biased (training-mode)
    scale_v = gamma[0] * jax.lax.rsqrt(var + BN_EPS)
    shift_v = beta[0] - mean * scale_v
    scale = scale_v[None, :]
    shift = shift_v[None, :]

    # mem-bound BN-apply + residual pass: large row tiles decoupled from tm
    tn2 = tm
    for mult in (8, 4, 2):
        if ni % mult == 0 and tm * mult <= 1024:
            tn2 = tm * mult
            break
    ni2 = n_pad // tn2

    out = pl.pallas_call(
        _bn_res_kernel,
        out_shape=jax.ShapeDtypeStruct((n_pad, cop), jnp.float32),
        grid=(ni2,),
        in_specs=[
            pl.BlockSpec((tn2, cop), lambda i: (i, 0)),
            pl.BlockSpec((tn2, cop), lambda i: (i, 0)),
            pl.BlockSpec((1, cop), lambda i: (0, 0)),
            pl.BlockSpec((1, cop), lambda i: (0, 0)),
        ],
        out_specs=pl.BlockSpec((tn2, cop), lambda i: (i, 0)),
        compiler_params=pltpu.CompilerParams(
            dimension_semantics=("parallel",)),
    )(h_pre, res, scale, shift)

    return out[:n, :cout]


def reference(x, edge_index, edge_attr, params):
    """Pure-JAX f32 reference of ResGraphModule.forward (residual=True, training-mode BN)."""
    src, dst = edge_index[0], edge_index[1]
    e_proj = edge_attr @ params["w_edge"]                         # (E, Cin)
    msg = e_proj * x[src]                                         # (E, Cin)
    agg = jnp.zeros_like(x).at[dst].add(msg)                      # (N, Cin)
    h = agg @ params["w_rel"] + params["b_rel"] + x @ params["w_root"]
    h = jnp.maximum(h, 0.0)
    mean = jnp.mean(h, axis=0, keepdims=True)
    var = jnp.mean((h - mean) ** 2, axis=0, keepdims=True)
    h = (h - mean) / jnp.sqrt(var + BN_EPS) * params["gamma"] + params["beta"]
    return h + x @ params["w_res"]


if __name__ == "__main__":
    # Small shapes consistent with the module. BatchNorm1d(in_channels) is applied to the
    # conv output, so (as in the original code) it only runs when in_channels == out_channels.
    N, E = 8, 16
    IN_C, OUT_C, EDGE_C = 32, 32, 16

    key = jax.random.PRNGKey(0)
    kx, ke, ks, kd, k1, k2, k3, k4 = jax.random.split(key, 8)

    x = jax.random.normal(kx, (N, IN_C), dtype=jnp.float32)
    edge_attr = jax.random.normal(ke, (E, EDGE_C), dtype=jnp.float32)
    edge_index = jnp.stack([
        jax.random.randint(ks, (E,), 0, N),
        jax.random.randint(kd, (E,), 0, N),
    ]).astype(jnp.int32)

    # Deterministic synthetic parameters (shapes from the module __init__),
    # stored pre-transposed as [fan_in, fan_out].
    params = {
        "w_edge": 0.1 * jax.random.normal(k1, (EDGE_C, IN_C), dtype=jnp.float32),
        "w_rel": 0.1 * jax.random.normal(k2, (IN_C, OUT_C), dtype=jnp.float32),
        "b_rel": 0.01 * jnp.ones((1, OUT_C), dtype=jnp.float32),
        "w_root": 0.1 * jax.random.normal(k3, (IN_C, OUT_C), dtype=jnp.float32),
        "gamma": jnp.ones((1, OUT_C), dtype=jnp.float32),   # BatchNorm1d weight init
        "beta": jnp.zeros((1, OUT_C), dtype=jnp.float32),   # BatchNorm1d bias init
        "w_res": 0.1 * jax.random.normal(k4, (IN_C, OUT_C), dtype=jnp.float32),
    }

    out = res_graph_module(x, edge_index, edge_attr, params)
    out = jax.block_until_ready(out)

    ref = reference(x, edge_index, edge_attr, params)
    assert out.shape == (N, OUT_C)
    # bf16 MXU operands with f32 accumulation vs pure-f32 reference -> 2e-2 tolerance
    assert jnp.allclose(out, ref, rtol=2e-2, atol=2e-2), "mismatch vs reference"

    print("KERNEL_OK")
</pallas_src>

<mosaic_0001>
module attributes {stable_mosaic.version = 11 : i64} {
  func.func @_msg_agg_kernel(%arg0: i32, %arg1: i32, %arg2: memref<1xi32, #tpu.memory_space<smem>>, %arg3: memref<1xi32, #tpu.memory_space<smem>>, %arg4: memref<8x128xbf16, #tpu.memory_space<vmem>>, %arg5: memref<128x128xbf16, #tpu.memory_space<vmem>>, %arg6: memref<1x128xi32, #tpu.memory_space<vmem>>, %arg7: memref<128x128xbf16, #tpu.memory_space<vmem>>, %arg8: memref<1x128xf32, #tpu.memory_space<vmem>>, %arg9: memref<128x256xbf16, #tpu.memory_space<vmem>>, %arg10: memref<8x128xbf16, #tpu.memory_space<vmem>>, %arg11: memref<8x128xbf16, #tpu.memory_space<vmem>>, %arg12: memref<8x128xf32, #tpu.memory_space<vmem>>, %arg13: memref<8x128xf32, #tpu.memory_space<vmem>>) attributes {dimension_semantics = [#tpu.dimension_semantics<parallel>, #tpu.dimension_semantics<arbitrary>], iteration_bounds = array<i64: 1, 1>, scalar_prefetch = 2 : i64, scratch_operands = 1 : i64, tpu.core_type = #tpu.core_type<tc>, window_params = [{transform_indices = @transform_0, window_bounds = array<i64: 8, 128>}, {transform_indices = @transform_1, window_bounds = array<i64: 128, 128>}, {transform_indices = @transform_2, window_bounds = array<i64: 1, 128>}, {pipeline_mode = #tpu.pipeline_mode<synchronous>, transform_indices = @transform_3, window_bounds = array<i64: 128, 128>}, {pipeline_mode = #tpu.pipeline_mode<synchronous>, transform_indices = @transform_4, window_bounds = array<i64: 1, 128>}, {pipeline_mode = #tpu.pipeline_mode<synchronous>, transform_indices = @transform_5, window_bounds = array<i64: 128, 256>}, {transform_indices = @transform_6, window_bounds = array<i64: 8, 128>}, {transform_indices = @transform_7, window_bounds = array<i64: 8, 128>}, {transform_indices = @transform_8, window_bounds = array<i64: 8, 128>}]} {
    %c8_i32 = arith.constant 8 : i32
    %0 = arith.muli %arg0, %c8_i32 : i32
    %c0_i32 = arith.constant 0 : i32
    %1 = arith.cmpi eq, %arg1, %c0_i32 : i32
    %2 = arith.extui %1 : i1 to i32
    %c0_i32_0 = arith.constant 0 : i32
    %3 = arith.cmpi ne, %2, %c0_i32_0 : i32
    scf.if %3 {
      %cst = arith.constant 0.000000e+00 : f32
      %16 = vector.broadcast %cst : f32 to vector<8x128xf32>
      %c0 = arith.constant 0 : index
      %c0_4 = arith.constant 0 : index
      %17 = vector.load %arg13[%c0, %c0_4] : memref<8x128xf32, #tpu.memory_space<vmem>>, vector<8x128xf32>
      tpu.vector_store %arg13[%c0, %c0_4], %16 {strides = array<i32>} : memref<8x128xf32, #tpu.memory_space<vmem>>, vector<8x128xf32>,
    } else {
    }
    %4 = arith.index_cast %arg0 : i32 to index
    %5 = memref.load %arg2[%4] : memref<1xi32, #tpu.memory_space<smem>>
    %6 = arith.cmpi sge, %arg1, %5 : i32
    %7 = arith.index_cast %arg0 : i32 to index
    %8 = memref.load %arg3[%7] : memref<1xi32, #tpu.memory_space<smem>>
    %9 = arith.cmpi sle, %arg1, %8 : i32
    %10 = arith.andi %6, %9 : i1
    %11 = arith.extui %10 : i1 to i32
    %c0_i32_1 = arith.constant 0 : i32
    %12 = arith.cmpi ne, %11, %c0_i32_1 : i32
    scf.if %12 {
      %16 = tpu.iota {dimensions = array<i32: 0>} : vector<8x1xi32>
      %17 = vector.broadcast %0 : i32 to vector<8x1xi32>
      %18 = arith.addi %17, %16 : vector<8x1xi32>
      %c0 = arith.constant 0 : index
      %c0_4 = arith.constant 0 : index
      %19 = vector.load %arg6[%c0, %c0_4] : memref<1x128xi32, #tpu.memory_space<vmem>>, vector<1x128xi32>
      %20 = vector.broadcast %18 : vector<8x1xi32> to vector<8x128xi32>
      %21 = vector.broadcast %19 : vector<1x128xi32> to vector<8x128xi32>
      %22 = arith.cmpi eq, %20, %21 : vector<8x128xi32>
      %23 = arith.extui %22 : vector<8x128xi1> to vector<8x128xi32>
      %24 = arith.sitofp %23 : vector<8x128xi32> to vector<8x128xf32>
      %25 = arith.truncf %24 : vector<8x128xf32> to vector<8x128xbf16>
      %c0_5 = arith.constant 0 : index
      %c0_6 = arith.constant 0 : index
      %26 = vector.load %arg13[%c0_5, %c0_6] : memref<8x128xf32, #tpu.memory_space<vmem>>, vector<8x128xf32>
      %c0_7 = arith.constant 0 : index
      %c0_8 = arith.constant 0 : index
      %27 = vector.load %arg5[%c0_7, %c0_8] : memref<128x128xbf16, #tpu.memory_space<vmem>>, vector<128x128xbf16>
      %cst = arith.constant dense<0.000000e+00> : vector<8x128xf32>
      %28 = tpu.matmul %25, %27, %cst {dimension_numbers = #tpu.dot_dimension_numbers<[1], [0], [0], [1], [0, 0, 1, 1], [], []>} : vector<8x128xbf16>, vector<128x128xbf16>, vector<8x128xf32> -> vector<8x128xf32>
      %29 = arith.addf %26, %28 : vector<8x128xf32>
      %c0_9 = arith.constant 0 : index
      %c0_10 = arith.constant 0 : index
      %30 = vector.load %arg13[%c0_9, %c0_10] : memref<8x128xf32, #tpu.memory_space<vmem>>, vector<8x128xf32>
      tpu.vector_store %arg13[%c0_9, %c0_10], %29 {strides = array<i32>} : memref<8x128xf32, #tpu.memory_space<vmem>>, vector<8x128xf32>,
    } else {
    }
    %c0_i32_2 = arith.constant 0 : i32
    %13 = arith.cmpi eq, %arg1, %c0_i32_2 : i32
    %14 = arith.extui %13 : i1 to i32
    %c0_i32_3 = arith.constant 0 : i32
    %15 = arith.cmpi ne, %14, %c0_i32_3 : i32
    scf.if %15 {
      %c0 = arith.constant 0 : index
      %c0_4 = arith.constant 0 : index
      %16 = vector.load %arg4[%c0, %c0_4] : memref<8x128xbf16, #tpu.memory_space<vmem>>, vector<8x128xbf16>
      %c0_5 = arith.constant 0 : index
      %c0_6 = arith.constant 0 : index
      %17 = vector.load %arg9[%c0_5, %c0_6] : memref<128x256xbf16, #tpu.memory_space<vmem>>, vector<128x256xbf16>
      %cst = arith.constant dense<0.000000e+00> : vector<8x256xf32>
      %18 = tpu.matmul %16, %17, %cst {dimension_numbers = #tpu.dot_dimension_numbers<[1], [0], [0], [1], [0, 0, 1, 1], [], []>} : vector<8x128xbf16>, vector<128x256xbf16>, vector<8x256xf32> -> vector<8x256xf32>
      %c0_7 = arith.constant 0 : index
      %c0_8 = arith.constant 0 : index
      %19 = vector.load %arg13[%c0_7, %c0_8] : memref<8x128xf32, #tpu.memory_space<vmem>>, vector<8x128xf32>
      %20 = arith.truncf %19 : vector<8x128xf32> to vector<8x128xbf16>
      %c0_9 = arith.constant 0 : index
      %c0_10 = arith.constant 0 : index
      %21 = vector.load %arg7[%c0_9, %c0_10] : memref<128x128xbf16, #tpu.memory_space<vmem>>, vector<128x128xbf16>
      %cst_11 = arith.constant dense<0.000000e+00> : vector<8x128xf32>
      %22 = tpu.matmul %20, %21, %cst_11 {dimension_numbers = #tpu.dot_dimension_numbers<[1], [0], [0], [1], [0, 0, 1, 1], [], []>} : vector<8x128xbf16>, vector<128x128xbf16>, vector<8x128xf32> -> vector<8x128xf32>
      %c0_12 = arith.constant 0 : index
      %c0_13 = arith.constant 0 : index
      %23 = vector.load %arg8[%c0_12, %c0_13] : memref<1x128xf32, #tpu.memory_space<vmem>>, vector<1x128xf32>
      %24 = vector.broadcast %23 : vector<1x128xf32> to vector<8x128xf32>
      %25 = arith.addf %22, %24 : vector<8x128xf32>
      %26 = vector.extract_strided_slice %18 {offsets = [0, 0], sizes = [8, 128], strides = [1, 1]} : vector<8x256xf32> to vector<8x128xf32>
      %27 = arith.addf %25, %26 : vector<8x128xf32>
      %cst_14 = arith.constant 0.000000e+00 : f32
      %28 = vector.broadcast %cst_14 : f32 to vector<8x128xf32>
      %29 = arith.maximumf %27, %28 : vector<8x128xf32>
      %30 = arith.truncf %29 : vector<8x128xf32> to vector<8x128xbf16>
      %c0_15 = arith.constant 0 : index
      %c0_16 = arith.constant 0 : index
      %31 = vector.load %arg10[%c0_15, %c0_16] : memref<8x128xbf16, #tpu.memory_space<vmem>>, vector<8x128xbf16>
      tpu.vector_store %arg10[%c0_15, %c0_16], %30 {strides = array<i32>} : memref<8x128xbf16, #tpu.memory_space<vmem>>, vector<8x128xbf16>,
      %32 = vector.extract_strided_slice %18 {offsets = [0, 128], sizes = [8, 128], strides = [1, 1]} : vector<8x256xf32> to vector<8x128xf32>
      %33 = arith.truncf %32 : vector<8x128xf32> to vector<8x128xbf16>
      %c0_17 = arith.constant 0 : index
      %c0_18 = arith.constant 0 : index
      %34 = vector.load %arg11[%c0_17, %c0_18] : memref<8x128xbf16, #tpu.memory_space<vmem>>, vector<8x128xbf16>
      tpu.vector_store %arg11[%c0_17, %c0_18], %33 {strides = array<i32>} : memref<8x128xbf16, #tpu.memory_space<vmem>>, vector<8x128xbf16>,
      %35 = tpu.iota {dimensions = array<i32: 0>} : vector<8x1xi32>
      %36 = vector.broadcast %0 : i32 to vector<8x1xi32>
      %37 = arith.addi %36, %35 : vector<8x1xi32>
      %c8_i32_19 = arith.constant 8 : i32
      %38 = vector.broadcast %c8_i32_19 : i32 to vector<8x1xi32>
      %39 = arith.cmpi slt, %37, %38 : vector<8x1xi32>
      %cst_20 = arith.constant 0.000000e+00 : f32
      %40 = vector.shape_cast %39 : vector<8x1xi1> to vector<8x1xi1>
      %41 = vector.broadcast %40 : vector<8x1xi1> to vector<8x128xi1>
      %42 = vector.broadcast %cst_20 : f32 to vector<8x128xf32>
      %43 = arith.select %41, %29, %42 : vector<8x128xi1>, vector<8x128xf32>
      %cst_21 = arith.constant dense<0.000000e+00> : vector<128xf32>
      %44 = vector.multi_reduction <add>, %43, %cst_21 [0] : vector<8x128xf32> to vector<128xf32>
      %45 = vector.shape_cast %44 : vector<128xf32> to vector<1x128xf32>
      %c0_22 = arith.constant 0 : index
      %c0_23 = arith.constant 0 : index
      %46 = vector.load %arg12[%c0_22, %c0_23] : memref<8x128xf32, #tpu.memory_space<vmem>>, vector<1x128xf32>
      tpu.vector_store %arg12[%c0_22, %c0_23], %45 {strides = array<i32>} : memref<8x128xf32, #tpu.memory_space<vmem>>, vector<1x128xf32>,
      %47 = arith.mulf %43, %43 : vector<8x128xf32>
      %cst_24 = arith.constant dense<0.000000e+00> : vector<128xf32>
      %48 = vector.multi_reduction <add>, %47, %cst_24 [0] : vector<8x128xf32> to vector<128xf32>
      %49 = vector.shape_cast %48 : vector<128xf32> to vector<1x128xf32>
      %c1 = arith.constant 1 : index
      %c0_25 = arith.constant 0 : index
      %50 = vector.load %arg12[%c1, %c0_25] : memref<8x128xf32, #tpu.memory_space<vmem>>, vector<1x128xf32>
      tpu.vector_store %arg12[%c1, %c0_25], %49 {strides = array<i32>} : memref<8x128xf32, #tpu.memory_space<vmem>>, vector<1x128xf32>,
    } else {
    }
    return
  }
  func.func @transform_0(%arg0: i32, %arg1: i32, %arg2: memref<1xi32, #tpu.memory_space<smem>>, %arg3: memref<1xi32, #tpu.memory_space<smem>>) -> (i32, i32) {
    %c0_i32 = arith.constant 0 : i32
    %c0_i32_0 = arith.constant 0 : i32
    return %arg0, %c0_i32 : i32, i32
  }
  func.func @transform_1(%arg0: i32, %arg1: i32, %arg2: memref<1xi32, #tpu.memory_space<smem>>, %arg3: memref<1xi32, #tpu.memory_space<smem>>) -> (i32, i32) {
    %0 = arith.index_cast %arg0 : i32 to index
    %1 = memref.load %arg2[%0] : memref<1xi32, #tpu.memory_space<smem>>
    %2 = arith.maxsi %arg1, %1 : i32
    %3 = arith.index_cast %arg0 : i32 to index
    %4 = memref.load %arg3[%3] : memref<1xi32, #tpu.memory_space<smem>>
    %5 = arith.minsi %2, %4 : i32
    %c0_i32 = arith.constant 0 : i32
    %c0_i32_0 = arith.constant 0 : i32
    return %5, %c0_i32 : i32, i32
  }
  func.func @transform_2(%arg0: i32, %arg1: i32, %arg2: memref<1xi32, #tpu.memory_space<smem>>, %arg3: memref<1xi32, #tpu.memory_space<smem>>) -> (i32, i32) {
    %0 = arith.index_cast %arg0 : i32 to index
    %1 = memref.load %arg2[%0] : memref<1xi32, #tpu.memory_space<smem>>
    %2 = arith.maxsi %arg1, %1 : i32
    %3 = arith.index_cast %arg0 : i32 to index
    %4 = memref.load %arg3[%3] : memref<1xi32, #tpu.memory_space<smem>>
    %5 = arith.minsi %2, %4 : i32
    %c0_i32 = arith.constant 0 : i32
    %c0_i32_0 = arith.constant 0 : i32
    return %c0_i32, %5 : i32, i32
  }
  func.func @transform_3(%arg0: i32, %arg1: i32, %arg2: memref<1xi32, #tpu.memory_space<smem>>, %arg3: memref<1xi32, #tpu.memory_space<smem>>) -> (i32, i32) {
    %c0_i32 = arith.constant 0 : i32
    %c0_i32_0 = arith.constant 0 : i32
    %c0_i32_1 = arith.constant 0 : i32
    return %c0_i32, %c0_i32_0 : i32, i32
  }
  func.func @transform_4(%arg0: i32, %arg1: i32, %arg2: memref<1xi32, #tpu.memory_space<smem>>, %arg3: memref<1xi32, #tpu.memory_space<smem>>) -> (i32, i32) {
    %c0_i32 = arith.constant 0 : i32
    %c0_i32_0 = arith.constant 0 : i32
    %c0_i32_1 = arith.constant 0 : i32
    return %c0_i32, %c0_i32_0 : i32, i32
  }
  func.func @transform_5(%arg0: i32, %arg1: i32, %arg2: memref<1xi32, #tpu.memory_space<smem>>, %arg3: memref<1xi32, #tpu.memory_space<smem>>) -> (i32, i32) {
    %c0_i32 = arith.constant 0 : i32
    %c0_i32_0 = arith.constant 0 : i32
    %c0_i32_1 = arith.constant 0 : i32
    return %c0_i32, %c0_i32_0 : i32, i32
  }
  func.func @transform_6(%arg0: i32, %arg1: i32, %arg2: memref<1xi32, #tpu.memory_space<smem>>, %arg3: memref<1xi32, #tpu.memory_space<smem>>) -> (i32, i32) {
    %c0_i32 = arith.constant 0 : i32
    %c0_i32_0 = arith.constant 0 : i32
    return %arg0, %c0_i32 : i32, i32
  }
  func.func @transform_7(%arg0: i32, %arg1: i32, %arg2: memref<1xi32, #tpu.memory_space<smem>>, %arg3: memref<1xi32, #tpu.memory_space<smem>>) -> (i32, i32) {
    %c0_i32 = arith.constant 0 : i32
    %c0_i32_0 = arith.constant 0 : i32
    return %arg0, %c0_i32 : i32, i32
  }
  func.func @transform_8(%arg0: i32, %arg1: i32, %arg2: memref<1xi32, #tpu.memory_space<smem>>, %arg3: memref<1xi32, #tpu.memory_space<smem>>) -> (i32, i32) {
    %c0_i32 = arith.constant 0 : i32
    %c0_i32_0 = arith.constant 0 : i32
    return %arg0, %c0_i32 : i32, i32
  }
}

</mosaic_0001>

<llo_original>
// kernel: tpu_custom_call.1
$region0: #{tpu_custom_call.1}
  #allocation0 [shape = 'u32[]', space=smem, size = 0x4, offset = 0x4, fixed_abs, tag = 'smem constant byte address 0x4 - core index']
  #allocation1 [shape = 'u32[144,128]{1,0:T(1,128)}', space=vmem, size = 0x12000, scoped, tag = 'internal scratch']
  #allocation2 [shape = 'f32[8,128]{1,0:T(8,128)}', space=vmem, size = 0x1000, scoped, tag = 'scratch operand']
  #allocation3 [shape = 's32[1]{0}', space=sflag, size = 0x4, scoped, tag = 'scoped memory for tpu_custom_call.1']
  #allocation4 [shape = 's32[1]{0:T(128)S(6)}', space=smem, size = 0x200, scoped, tag = 'prefetched SMEM operand 0']
  #allocation5 [shape = 's32[1]{0:T(128)S(6)}', space=smem, size = 0x200, scoped, tag = 'prefetched SMEM operand 1']
  %s0 = inlined_call_operand.<no memory space> [shape: s32[1], index: 0, kind: input, shape index: {}]
  %s1 = inlined_call_operand.<no memory space> [shape: s32[1], index: 1, kind: input, shape index: {}]
  %s2 = inlined_call_operand.vmem [shape: bf16[8,128], index: 2, kind: input, shape index: {}]
  %s3 = inlined_call_operand.hbm [shape: bf16[128,128], index: 3, kind: input, shape index: {}]
  %s4 = inlined_call_operand.vmem [shape: s32[1,128], index: 4, kind: input, shape index: {}]
  %s5 = inlined_call_operand.hbm [shape: bf16[128,128], index: 5, kind: input, shape index: {}]
  %s6 = inlined_call_operand.vmem [shape: f32[1,128], index: 6, kind: input, shape index: {}]
  %s7 = inlined_call_operand.hbm [shape: bf16[128,256], index: 7, kind: input, shape index: {}]
  %s8 = inlined_call_operand.hbm [shape: bf16[8,128], index: 8, kind: output, shape index: {0}]
  %s9 = inlined_call_operand.hbm [shape: bf16[8,128], index: 9, kind: output, shape index: {1}]
  %s10 = inlined_call_operand.hbm [shape: f32[8,128], index: 10, kind: output, shape index: {2}]
  %11 = xla_tuple %s8, %s9, %s10
  %s12 = sld [smem:[#allocation0]]
  $region74: #{tpu_custom_call.1} parent=0
    _
  %s14 = ssub.s32 1, %s12
  %s15 = scalar_select 0, %s14, %s12
  %16 = sst [smem:[#allocation4]] %s0
  %17 = sst [smem:[#allocation5]] %s1
  $region1: #{tpu_custom_call.1} parent=0
    #allocation6 [shape = 'u8[32768]{0}', space=vmem, size = 0x8000, scoped, tag = 'input window, operand 3, single buffered']
    #allocation7 [shape = 's32[1]{0}', space=sflag, size = 0x4, scoped, tag = 'scoped memory for tpu_custom_call.1']
    #allocation8 [shape = 's32[1]{0}', space=sflag, size = 0x4, scoped, tag = 'scoped memory for tpu_custom_call.1']
    #allocation9 [shape = 'u8[32768]{0}', space=vmem, size = 0x8000, scoped, tag = 'input window, operand 5, single buffered']
    #allocation10 [shape = 's32[1]{0}', space=sflag, size = 0x4, scoped, tag = 'scoped memory for tpu_custom_call.1']
    #allocation11 [shape = 'u8[65536]{0}', space=vmem, size = 0x10000, scoped, tag = 'input window, operand 7, single buffered']
    #allocation12 [shape = 'u8[2048]{0}', space=vmem, size = 0x800, scoped, tag = 'output window, operand 0, single buffered']
    #allocation13 [shape = 'u8[2048]{0}', space=vmem, size = 0x800, scoped, tag = 'output window, operand 1, single buffered']
    #allocation14 [shape = 's32[1]{0}', space=sflag, size = 0x4, scoped, tag = 'scoped memory for tpu_custom_call.1']
    #allocation15 [shape = 'u8[4096]{0}', space=vmem, size = 0x1000, scoped, tag = 'output window, operand 2, single buffered']
    %18 = vsyncpa [#allocation7], 0
    %19 = vsyncpa [#allocation10], 0
    %20 = vsyncpa [#allocation8], 0
    %21 = vsyncpa [#allocation14], 0
    // Predicated region
    $region2: #{tpu_custom_call.1} parent=1 // pred_check
      _
    $region3: #{tpu_custom_call.1} parent=1 // pred_check_branch
      %23 = sbr.rel (0) target = $region5
    $region4: #{tpu_custom_call.1} parent=1 // pred_region
      _
    $region5: #{tpu_custom_call.1} parent=1 // pred_fallthru
      _
    // Predicated region
    $region6: #{tpu_custom_call.1} parent=1 // pred_check
      _
    $region7: #{tpu_custom_call.1} parent=1 // pred_check_branch
      %25 = sbr.rel (0) target = $region9
    $region8: #{tpu_custom_call.1} parent=1 // pred_region
      %s26 = sld [smem:[#allocation4]]
      %p27 = scmp.gt.s32.totalorder 0, %s26
      %s28 = scalar_select %p27, 0, %s26
      %s29 = sld [smem:[#allocation5]]
      %p30 = scmp.lt.s32.totalorder %s28, %s29
      %s31 = scalar_select %p30, %s28, %s29
      %s32 = smul.u32 16, %s31
      %s34 = ssub.s32 1024, 1024
      %35 = vsyncadd [#allocation7], %s34
      %s36 = smul.addr %s32, 64
      %s37 = scalar_lea.hbm %s3, %s36
      %s38 = sshll.u32 [#allocation6], 4
      %s39 = int_to_ptr.vmem [resolvable:$true] %s38
      %44 = dma.hbm_to_vmem [thread:$0]  %s37, 1024, %s39, [#allocation7], 64, 64, 4
    $region9: #{tpu_custom_call.1} parent=1 // pred_fallthru
      _
    // Predicated region
    $region10: #{tpu_custom_call.1} parent=1 // pred_check
      _
    $region11: #{tpu_custom_call.1} parent=1 // pred_check_branch
      %46 = sbr.rel (0) target = $region13
    $region12: #{tpu_custom_call.1} parent=1 // pred_region
      %s47 = sld [smem:[#allocation4]]
      %p48 = scmp.gt.s32.totalorder 0, %s47
      %s49 = scalar_select %p48, 0, %s47
      %s50 = sld [smem:[#allocation5]]
      %p51 = scmp.lt.s32.totalorder %s49, %s50
      %s52 = scalar_select %p51, %s49, %s50
      %p53 = scmp.lt.s32.totalorder %s52, 0
      %s54 = scalar_select %p53, %s52, 0
      %s55 = scalar_lea.vmem %s4, %s54
      %s56 = sld [smem:[#allocation4]]
      %p57 = scmp.gt.s32.totalorder 0, %s56
      %s58 = scalar_select %p57, 0, %s56
      %s59 = sld [smem:[#allocation5]]
      %p60 = scmp.lt.s32.totalorder %s58, %s59
      %s61 = scalar_select %p60, %s58, %s59
    $region13: #{tpu_custom_call.1} parent=1 // pred_fallthru
      _
    // Predicated region
    $region14: #{tpu_custom_call.1} parent=1 // pred_check
      _
    $region15: #{tpu_custom_call.1} parent=1 // pred_check_branch
      %63 = sbr.rel (0) target = $region17
    $region16: #{tpu_custom_call.1} parent=1 // pred_region
      %s65 = ssub.s32 1024, 1024
      %66 = vsyncadd [#allocation10], %s65
      %s67 = sshll.u32 [#allocation9], 4
      %s68 = int_to_ptr.vmem [resolvable:$true] %s67
      %73 = dma.hbm_to_vmem [thread:$0]  %s5, 1024, %s68, [#allocation10], 64, 64, 4
    $region17: #{tpu_custom_call.1} parent=1 // pred_fallthru
      _
    // Predicated region
    $region18: #{tpu_custom_call.1} parent=1 // pred_check
      _
    $region19: #{tpu_custom_call.1} parent=1 // pred_check_branch
      %75 = sbr.rel (0) target = $region21
    $region20: #{tpu_custom_call.1} parent=1 // pred_region
      _
    $region21: #{tpu_custom_call.1} parent=1 // pred_fallthru
      _
    // Predicated region
    $region22: #{tpu_custom_call.1} parent=1 // pred_check
      _
    $region23: #{tpu_custom_call.1} parent=1 // pred_check_branch
      %77 = sbr.rel (0) target = $region25
    $region24: #{tpu_custom_call.1} parent=1 // pred_region
      %s79 = ssub.s32 2048, 2048
      %80 = vsyncadd [#allocation10], %s79
      %s81 = sshll.u32 [#allocation11], 4
      %s82 = int_to_ptr.vmem [resolvable:$true] %s81
      %87 = dma.hbm_to_vmem [thread:$0]  %s7, 2048, %s82, [#allocation10], 128, 128, 8
    $region25: #{tpu_custom_call.1} parent=1 // pred_fallthru
      _
    // Predicated region
    $region26: #{tpu_custom_call.1} parent=1 // pred_check
      _
    $region27: #{tpu_custom_call.1} parent=1 // pred_check_branch
      %89 = sbr.rel (0) target = $region29
    $region28: #{tpu_custom_call.1} parent=1 // pred_region
      %90 = dma.done [#allocation7], 1024
    $region29: #{tpu_custom_call.1} parent=1 // pred_fallthru
      _
    // Predicated region
    $region30: #{tpu_custom_call.1} parent=1 // pred_check
      _
    $region31: #{tpu_custom_call.1} parent=1 // pred_check_branch
      %92 = sbr.rel (0) target = $region33
    $region32: #{tpu_custom_call.1} parent=1 // pred_region
      %93 = dma.done [#allocation10], 1024
    $region33: #{tpu_custom_call.1} parent=1 // pred_fallthru
      _
    // Predicated region
    $region34: #{tpu_custom_call.1} parent=1 // pred_check
      _
    $region35: #{tpu_custom_call.1} parent=1 // pred_check_branch
      %95 = sbr.rel (0) target = $region37
    $region36: #{tpu_custom_call.1} parent=1 // pred_region
      %96 = dma.done [#allocation10], 2048
    $region37: #{tpu_custom_call.1} parent=1 // pred_fallthru
      _
    %s97 = sld [smem:[#allocation4]]
    %p98 = scmp.gt.s32.totalorder 0, %s97
    %s99 = scalar_select %p98, 0, %s97
    %s100 = sld [smem:[#allocation5]]
    %p101 = scmp.lt.s32.totalorder %s99, %s100
    %s102 = scalar_select %p101, %s99, %s100
    %p103 = scmp.lt.s32.totalorder %s102, 0
    %s104 = scalar_select %p103, %s102, 0
    %s105 = scalar_lea.vmem %s4, %s104
    %s106 = sld [smem:[#allocation4]]
    %p107 = scmp.gt.s32.totalorder 0, %s106
    %s108 = scalar_select %p107, 0, %s106
    %s109 = sld [smem:[#allocation5]]
    %p110 = scmp.lt.s32.totalorder %s108, %s109
    %s111 = scalar_select %p110, %s108, %s109
    %s112 = smul.u32 16, %s111
    %s113 = sld [smem:[#allocation4]]
    %p114 = scmp.gt.s32.totalorder 0, %s113
    %s115 = scalar_select %p114, 0, %s113
    %s116 = sld [smem:[#allocation5]]
    %p117 = scmp.lt.s32.totalorder %s115, %s116
    %s118 = scalar_select %p117, %s115, %s116
    %p119 = scmp.lt.s32.totalorder %s118, 0
    %s120 = scalar_select %p119, %s118, 0
    %s121 = scalar_lea.vmem %s4, %s120
    %s122 = sld [smem:[#allocation4]]
    %p123 = scmp.gt.s32.totalorder 0, %s122
    %s124 = scalar_select %p123, 0, %s122
    %s125 = sld [smem:[#allocation5]]
    %p126 = scmp.lt.s32.totalorder %s124, %s125
    %s127 = scalar_select %p126, %s124, %s125
    %s129 = smul.u32 0, 8
    %p130 = scmp.eq.s32.totalorder 0, 0
    // Predicated region
    $region38: #{tpu_custom_call.1} parent=1 // pred_check
      %p131 = pneg %p130
    $region39: #{tpu_custom_call.1} parent=1 // pred_check_branch
      %133 = sbr.rel (%p131) target = $region41
    $region40: #{tpu_custom_call.1} parent=1 // pred_region
      %134 = vst [vmem:[#allocation2] sm:$0xff] 0.0
    $region41: #{tpu_custom_call.1} parent=1 // pred_fallthru
      _
    %s135 = sld [smem:[#allocation4]]
    %p136 = scmp.ge.s32.totalorder 0, %s135
    %s137 = sld [smem:[#allocation5]]
    %p138 = scmp.le.s32.totalorder 0, %s137
    %p139 = pnand %p136, %p138
    %p140 = pneg %p139
    // Predicated region
    $region42: #{tpu_custom_call.1} parent=1 // pred_check
      _
    $region43: #{tpu_custom_call.1} parent=1 // pred_check_branch
      %142 = sbr.rel (%p139) target = $region45
    $region44: #{tpu_custom_call.1} parent=1 // pred_region
      %v143 = vlaneseq
      %v144 = vshrl.u32 %v143, 7
      %v145 = vstv %s129
      %v146 = vadd.s32 %v145, %v144
      %v147 = vld [vmem:[%s121] sm:$0x1]
      %v148 = vlaneseq
      %v149 = vshrl.u32 %v148, 7
      %v150 = vsub.s32 0, %v149
      %v151 = vrot.slane %v147, %v150
      %vm152 = vcmp.eq.s32.totalorder %v146, %v151
      %v153 = vsel %vm152, 1, 0
      %v154 = vcvt.s32.f32 %v153
      %v155 = vpack.c.bf16 %v154, %v154
      %v156 = vld [vmem:[#allocation2] sm:$0xff]
      %v157 = vld [vmem:[#allocation6] sm:$0xf]
      %v158 = vld [vmem:[#allocation6 + $0x4] sm:$0xf]
      %v159 = vld [vmem:[#allocation6 + $0x8] sm:$0xf]
      %v160 = vld [vmem:[#allocation6 + $0xc] sm:$0xf]
      %v161 = vld [vmem:[#allocation6 + $0x10] sm:$0xf]
      %v162 = vld [vmem:[#allocation6 + $0x14] sm:$0xf]
      %v163 = vld [vmem:[#allocation6 + $0x18] sm:$0xf]
      %v164 = vld [vmem:[#allocation6 + $0x1c] sm:$0xf]
      %v165 = vld [vmem:[#allocation6 + $0x20] sm:$0xf]
      %v166 = vld [vmem:[#allocation6 + $0x24] sm:$0xf]
      %v167 = vld [vmem:[#allocation6 + $0x28] sm:$0xf]
      %v168 = vld [vmem:[#allocation6 + $0x2c] sm:$0xf]
      %v169 = vld [vmem:[#allocation6 + $0x30] sm:$0xf]
      %v170 = vld [vmem:[#allocation6 + $0x34] sm:$0xf]
      %v171 = vld [vmem:[#allocation6 + $0x38] sm:$0xf]
      %v172 = vld [vmem:[#allocation6 + $0x3c] sm:$0xf]
      %v189 = vunpack.c.l.b16 %v157
      %v190 = vunpack.c.l.b16 %v158
      %v191 = vunpack.c.l.b16 %v159
      %v192 = vunpack.c.l.b16 %v160
      %v193 = vunpack.c.l.b16 %v161
      %v194 = vunpack.c.l.b16 %v162
      %v195 = vunpack.c.l.b16 %v163
      %v196 = vunpack.c.l.b16 %v164
      %v197 = vunpack.c.l.b16 %v165
      %v198 = vunpack.c.l.b16 %v166
      %v199 = vunpack.c.l.b16 %v167
      %v200 = vunpack.c.l.b16 %v168
      %v201 = vunpack.c.l.b16 %v169
      %v202 = vunpack.c.l.b16 %v170
      %v203 = vunpack.c.l.b16 %v171
      %v204 = vunpack.c.l.b16 %v172
      %v205 = vpack.c.b16 %v190, %v189
      %v206 = vpack.c.b16 %v192, %v191
      %v207 = vpack.c.b16 %v194, %v193
      %v208 = vpack.c.b16 %v196, %v195
      %v209 = vpack.c.b16 %v198, %v197
      %v210 = vpack.c.b16 %v200, %v199
      %v211 = vpack.c.b16 %v202, %v201
      %v212 = vpack.c.b16 %v204, %v203
      %221 = vmatprep.subr.bf16.mxu0 0
      %222 = vmatpush1.bf16.msra.mxu0 %v205
      %223 = vmatprep.subr.bf16.mxu0 0
      %224 = vmatpush1.bf16.msra.mxu0 %v206
      %225 = vmatprep.subr.bf16.mxu0 0
      %226 = vmatpush1.bf16.msra.mxu0 %v207
      %227 = vmatprep.subr.bf16.mxu0 0
      %228 = vmatpush1.bf16.msra.mxu0 %v208
      %229 = vmatprep.subr.bf16.mxu0 0
      %230 = vmatpush1.bf16.msra.mxu0 %v209
      %231 = vmatprep.subr.bf16.mxu0 0
      %232 = vmatpush1.bf16.msra.mxu0 %v210
      %233 = vmatprep.subr.bf16.mxu0 0
      %234 = vmatpush1.bf16.msra.mxu0 %v211
      %235 = vmatprep.subr.bf16.mxu0 0
      %236 = vmatpush1.bf16.msra.mxu0 %v212
      %237 = vmatprep.subr.bf16.mxu0 0
      %238 = vmatpush1.bf16.msra.mxu0 0
      %239 = vmatprep.subr.bf16.mxu0 0
      %240 = vmatpush1.bf16.msra.mxu0 0
      %241 = vmatprep.subr.bf16.mxu0 0
      %242 = vmatpush1.bf16.msra.mxu0 0
      %243 = vmatprep.subr.bf16.mxu0 0
      %244 = vmatpush1.bf16.msra.mxu0 0
      %245 = vmatprep.subr.bf16.mxu0 0
      %246 = vmatpush1.bf16.msra.mxu0 0
      %247 = vmatprep.subr.bf16.mxu0 0
      %248 = vmatpush1.bf16.msra.mxu0 0
      %249 = vmatprep.subr.bf16.mxu0 0
      %250 = vmatpush1.bf16.msra.mxu0 0
      %251 = vmatprep.subr.bf16.mxu0 0
      %252 = vmatpush1.bf16.msra.mxu0 0
      %253 = vmatprep.mubr.bf16.mxu0 0
      %254 = vmatmul.mubr.bf16.gmra.mrb[0].mxu0 %v155
      %v255 = vpop.f32.mrb[0].mxu0
      %v256 = vadd.f32 0.0, %v255
      %v257 = vpop.f32.mrb[0].mxu0
      %v258 = vpop.f32.mrb[0].mxu0
      %v259 = vpop.f32.mrb[0].mxu0
      %260 = vdwg.mxu0
      %v261 = vadd.f32 %v156, %v256
      %262 = vst [vmem:[#allocation2] sm:$0xff] %v261
    $region45: #{tpu_custom_call.1} parent=1 // pred_fallthru
      _
    // Predicated region
    $region46: #{tpu_custom_call.1} parent=1 // pred_check
      %p263 = pneg %p130
    $region47: #{tpu_custom_call.1} parent=1 // pred_check_branch
      %265 = sbr.rel (%p263) target = $region49
    $region48: #{tpu_custom_call.1} parent=1 // pred_region
      %v266 = vld [vmem:[%s2] sm:$0xf]
      %v267 = vld [vmem:[#allocation11] sm:$0xff]
      %v268 = vld [vmem:[#allocation11 + $0x8] sm:$0xff]
      %v269 = vld [vmem:[#allocation11 + $0x10] sm:$0xff]
      %v270 = vld [vmem:[#allocation11 + $0x18] sm:$0xff]
      %v271 = vld [vmem:[#allocation11 + $0x20] sm:$0xff]
      %v272 = vld [vmem:[#allocation11 + $0x28] sm:$0xff]
      %v273 = vld [vmem:[#allocation11 + $0x30] sm:$0xff]
      %v274 = vld [vmem:[#allocation11 + $0x38] sm:$0xff]
      %v275 = vld [vmem:[#allocation11 + $0x40] sm:$0xff]
      %v276 = vld [vmem:[#allocation11 + $0x48] sm:$0xff]
      %v277 = vld [vmem:[#allocation11 + $0x50] sm:$0xff]
      %v278 = vld [vmem:[#allocation11 + $0x58] sm:$0xff]
      %v279 = vld [vmem:[#allocation11 + $0x60] sm:$0xff]
      %v280 = vld [vmem:[#allocation11 + $0x68] sm:$0xff]
      %v281 = vld [vmem:[#allocation11 + $0x70] sm:$0xff]
      %v282 = vld [vmem:[#allocation11 + $0x78] sm:$0xff]
      %v299 = vunpack.c.l.b16 %v267
      %v300 = vunpack.c.h.b16 %v267
      %v301 = vunpack.c.l.b16 %v268
      %v302 = vunpack.c.h.b16 %v268
      %v303 = vunpack.c.l.b16 %v269
      %v304 = vunpack.c.h.b16 %v269
      %v305 = vunpack.c.l.b16 %v270
      %v306 = vunpack.c.h.b16 %v270
      %v307 = vunpack.c.l.b16 %v271
      %v308 = vunpack.c.h.b16 %v271
      %v309 = vunpack.c.l.b16 %v272
      %v310 = vunpack.c.h.b16 %v272
      %v311 = vunpack.c.l.b16 %v273
      %v312 = vunpack.c.h.b16 %v273
      %v313 = vunpack.c.l.b16 %v274
      %v314 = vunpack.c.h.b16 %v274
      %v315 = vunpack.c.l.b16 %v275
      %v316 = vunpack.c.h.b16 %v275
      %v317 = vunpack.c.l.b16 %v276
      %v318 = vunpack.c.h.b16 %v276
      %v319 = vunpack.c.l.b16 %v277
      %v320 = vunpack.c.h.b16 %v277
      %v321 = vunpack.c.l.b16 %v278
      %v322 = vunpack.c.h.b16 %v278
      %v323 = vunpack.c.l.b16 %v279
      %v324 = vunpack.c.h.b16 %v279
      %v325 = vunpack.c.l.b16 %v280
      %v326 = vunpack.c.h.b16 %v280
      %v327 = vunpack.c.l.b16 %v281
      %v328 = vunpack.c.h.b16 %v281
      %v329 = vunpack.c.l.b16 %v282
      %v330 = vunpack.c.h.b16 %v282
      %v331 = vpack.c.b16 %v301, %v299
      %v332 = vpack.c.b16 %v302, %v300
      %v333 = vpack.c.b16 %v305, %v303
      %v334 = vpack.c.b16 %v306, %v304
      %v335 = vpack.c.b16 %v309, %v307
      %v336 = vpack.c.b16 %v310, %v308
      %v337 = vpack.c.b16 %v313, %v311
      %v338 = vpack.c.b16 %v314, %v312
      %v339 = vpack.c.b16 %v317, %v315
      %v340 = vpack.c.b16 %v318, %v316
      %v341 = vpack.c.b16 %v321, %v319
      %v342 = vpack.c.b16 %v322, %v320
      %v343 = vpack.c.b16 %v325, %v323
      %v344 = vpack.c.b16 %v326, %v324
      %v345 = vpack.c.b16 %v329, %v327
      %v346 = vpack.c.b16 %v330, %v328
      %363 = vmatprep.subr.bf16.mxu0 %v332
      %364 = vmatpush1.bf16.msra.mxu0 %v331
      %365 = vmatprep.subr.bf16.mxu0 %v334
      %366 = vmatpush1.bf16.msra.mxu0 %v333
      %367 = vmatprep.subr.bf16.mxu0 %v336
      %368 = vmatpush1.bf16.msra.mxu0 %v335
      %369 = vmatprep.subr.bf16.mxu0 %v338
      %370 = vmatpush1.bf16.msra.mxu0 %v337
      %371 = vmatprep.subr.bf16.mxu0 %v340
      %372 = vmatpush1.bf16.msra.mxu0 %v339
      %373 = vmatprep.subr.bf16.mxu0 %v342
      %374 = vmatpush1.bf16.msra.mxu0 %v341
      %375 = vmatprep.subr.bf16.mxu0 %v344
      %376 = vmatpush1.bf16.msra.mxu0 %v343
      %377 = vmatprep.subr.bf16.mxu0 %v346
      %378 = vmatpush1.bf16.msra.mxu0 %v345
      %379 = vmatprep.subr.bf16.mxu0 0
      %380 = vmatpush1.bf16.msra.mxu0 0
      %381 = vmatprep.subr.bf16.mxu0 0
      %382 = vmatpush1.bf16.msra.mxu0 0
      %383 = vmatprep.subr.bf16.mxu0 0
      %384 = vmatpush1.bf16.msra.mxu0 0
      %385 = vmatprep.subr.bf16.mxu0 0
      %386 = vmatpush1.bf16.msra.mxu0 0
      %387 = vmatprep.subr.bf16.mxu0 0
      %388 = vmatpush1.bf16.msra.mxu0 0
      %389 = vmatprep.subr.bf16.mxu0 0
      %390 = vmatpush1.bf16.msra.mxu0 0
      %391 = vmatprep.subr.bf16.mxu0 0
      %392 = vmatpush1.bf16.msra.mxu0 0
      %393 = vmatprep.subr.bf16.mxu0 0
      %394 = vmatpush1.bf16.msra.mxu0 0
      %395 = vmatprep.mubr.bf16.mxu0 0
      %396 = vmatmul.mubr.bf16.gmra.mrb[0].mxu0 %v266
      %v397 = vpop.f32.mrb[0].mxu0
      %v398 = vadd.f32 0.0, %v397
      %v399 = vpop.f32.mrb[0].mxu0
      %v400 = vadd.f32 0.0, %v399
      %v401 = vpop.f32.mrb[0].mxu0
      %v402 = vpop.f32.mrb[0].mxu0
      %403 = vdwg.mxu0
      %v404 = vld [vmem:[#allocation2] sm:$0xff]
      %v405 = vpack.c.bf16 %v404, %v404
      %v406 = vld [vmem:[#allocation9] sm:$0xf]
      %v407 = vld [vmem:[#allocation9 + $0x4] sm:$0xf]
      %v408 = vld [vmem:[#allocation9 + $0x8] sm:$0xf]
      %v409 = vld [vmem:[#allocation9 + $0xc] sm:$0xf]
      %v410 = vld [vmem:[#allocation9 + $0x10] sm:$0xf]
      %v411 = vld [vmem:[#allocation9 + $0x14] sm:$0xf]
      %v412 = vld [vmem:[#allocation9 + $0x18] sm:$0xf]
      %v413 = vld [vmem:[#allocation9 + $0x1c] sm:$0xf]
      %v414 = vld [vmem:[#allocation9 + $0x20] sm:$0xf]
      %v415 = vld [vmem:[#allocation9 + $0x24] sm:$0xf]
      %v416 = vld [vmem:[#allocation9 + $0x28] sm:$0xf]
      %v417 = vld [vmem:[#allocation9 + $0x2c] sm:$0xf]
      %v418 = vld [vmem:[#allocation9 + $0x30] sm:$0xf]
      %v419 = vld [vmem:[#allocation9 + $0x34] sm:$0xf]
      %v420 = vld [vmem:[#allocation9 + $0x38] sm:$0xf]
      %v421 = vld [vmem:[#allocation9 + $0x3c] sm:$0xf]
      %v422 = vld [vmem:[%s6] sm:$0x1]
      %v424 = vlaneseq
      %v425 = vshrl.u32 %v424, 7
      %v426 = vsub.s32 0, %v425
      %v427 = vrot.slane %v422, %v426
      %v445 = vunpack.c.l.b16 %v406
      %v446 = vunpack.c.l.b16 %v407
      %v447 = vunpack.c.l.b16 %v408
      %v448 = vunpack.c.l.b16 %v409
      %v449 = vunpack.c.l.b16 %v410
      %v450 = vunpack.c.l.b16 %v411
      %v451 = vunpack.c.l.b16 %v412
      %v452 = vunpack.c.l.b16 %v413
      %v453 = vunpack.c.l.b16 %v414
      %v454 = vunpack.c.l.b16 %v415
      %v455 = vunpack.c.l.b16 %v416
      %v456 = vunpack.c.l.b16 %v417
      %v457 = vunpack.c.l.b16 %v418
      %v458 = vunpack.c.l.b16 %v419
      %v459 = vunpack.c.l.b16 %v420
      %v460 = vunpack.c.l.b16 %v421
      %v461 = vpack.c.b16 %v446, %v445
      %v462 = vpack.c.b16 %v448, %v447
      %v463 = vpack.c.b16 %v450, %v449
      %v464 = vpack.c.b16 %v452, %v451
      %v465 = vpack.c.b16 %v454, %v453
      %v466 = vpack.c.b16 %v456, %v455
      %v467 = vpack.c.b16 %v458, %v457
      %v468 = vpack.c.b16 %v460, %v459
      %477 = vmatprep.subr.bf16.mxu0 0
      %478 = vmatpush1.bf16.msra.mxu0 %v461
      %479 = vmatprep.subr.bf16.mxu0 0
      %480 = vmatpush1.bf16.msra.mxu0 %v462
      %481 = vmatprep.subr.bf16.mxu0 0
      %482 = vmatpush1.bf16.msra.mxu0 %v463
      %483 = vmatprep.subr.bf16.mxu0 0
      %484 = vmatpush1.bf16.msra.mxu0 %v464
      %485 = vmatprep.subr.bf16.mxu0 0
      %486 = vmatpush1.bf16.msra.mxu0 %v465
      %487 = vmatprep.subr.bf16.mxu0 0
      %488 = vmatpush1.bf16.msra.mxu0 %v466
      %489 = vmatprep.subr.bf16.mxu0 0
      %490 = vmatpush1.bf16.msra.mxu0 %v467
      %491 = vmatprep.subr.bf16.mxu0 0
      %492 = vmatpush1.bf16.msra.mxu0 %v468
      %493 = vmatprep.subr.bf16.mxu0 0
      %494 = vmatpush1.bf16.msra.mxu0 0
      %495 = vmatprep.subr.bf16.mxu0 0
      %496 = vmatpush1.bf16.msra.mxu0 0
      %497 = vmatprep.subr.bf16.mxu0 0
      %498 = vmatpush1.bf16.msra.mxu0 0
      %499 = vmatprep.subr.bf16.mxu0 0
      %500 = vmatpush1.bf16.msra.mxu0 0
      %501 = vmatprep.subr.bf16.mxu0 0
      %502 = vmatpush1.bf16.msra.mxu0 0
      %503 = vmatprep.subr.bf16.mxu0 0
      %504 = vmatpush1.bf16.msra.mxu0 0
      %505 = vmatprep.subr.bf16.mxu0 0
      %506 = vmatpush1.bf16.msra.mxu0 0
      %507 = vmatprep.subr.bf16.mxu0 0
      %508 = vmatpush1.bf16.msra.mxu0 0
      %509 = vmatprep.mubr.bf16.mxu0 0
      %510 = vmatmul.mubr.bf16.gmra.mrb[0].mxu0 %v405
      %v511 = vpop.f32.mrb[0].mxu0
      %v512 = vadd.f32 %v427, %v511
      %v513 = vpop.f32.mrb[0].mxu0
      %v514 = vpop.f32.mrb[0].mxu0
      %v515 = vpop.f32.mrb[0].mxu0
      %516 = vdwg.mxu0
      %v517 = vadd.f32 %v512, %v398
      %v518 = vmax.f32 %v517, 0.0
      %v519 = vpack.c.bf16 %v518, %v518
      %520 = vst [vmem:[#allocation12] sm:$0xf] %v519
      %v521 = vpack.c.bf16 %v400, %v400
      %522 = vst [vmem:[#allocation13] sm:$0xf] %v521
      %v523 = vlaneseq
      %v524 = vshrl.u32 %v523, 7
      %v525 = vstv %s129
      %v526 = vadd.s32 %v525, %v524
      %vm527 = vcmp.lt.s32.totalorder %v526, 8
      %v528 = vsel %vm527, 1, 0
      %vm529 = vcmp.eq.s32.totalorder %v528, 1
      %v530 = vsel %vm529, %v518, 0.0
      %v531 = vrot.slane %v530, 4
      %v532 = vadd.f32 %v530, %v531
      %v533 = vrot.slane %v532, 2
      %v534 = vadd.f32 %v532, %v533
      %v535 = vrot.slane %v534, 1
      %v536 = vadd.f32 %v534, %v535
      %537 = vst [vmem:[#allocation15] sm:$0x1] %v536
      %v538 = vmul.f32 %v530, %v530
      %v539 = vrot.slane %v538, 4
      %v540 = vadd.f32 %v538, %v539
      %v541 = vrot.slane %v540, 2
      %v542 = vadd.f32 %v540, %v541
      %v543 = vrot.slane %v542, 1
      %v544 = vadd.f32 %v542, %v543
      %545 = vst [vmem:[#allocation15 + $0x1] sm:$0x1] %v544
    $region49: #{tpu_custom_call.1} parent=1 // pred_fallthru
      _
    // Predicated region
    $region50: #{tpu_custom_call.1} parent=1 // pred_check
      _
    $region51: #{tpu_custom_call.1} parent=1 // pred_check_branch
      %547 = sbr.rel (0) target = $region53
    $region52: #{tpu_custom_call.1} parent=1 // pred_region
      %s549 = ssub.s32 64, 64
      %550 = vsyncadd [#allocation8], %s549
      %s552 = sshll.u32 [#allocation12], 4
      %s553 = int_to_ptr.vmem [resolvable:$true] %s552
      %555 = dma.vmem_to_hbm [thread:$0]  %s553, 64, %s8, [#allocation8]
    $region53: #{tpu_custom_call.1} parent=1 // pred_fallthru
      _
    // Predicated region
    $region54: #{tpu_custom_call.1} parent=1 // pred_check
      _
    $region55: #{tpu_custom_call.1} parent=1 // pred_check_branch
      %557 = sbr.rel (0) target = $region57
    $region56: #{tpu_custom_call.1} parent=1 // pred_region
      %s559 = ssub.s32 64, 64
      %560 = vsyncadd [#allocation14], %s559
      %s562 = sshll.u32 [#allocation13], 4
      %s563 = int_to_ptr.vmem [resolvable:$true] %s562
      %565 = dma.vmem_to_hbm [thread:$0]  %s563, 64, %s9, [#allocation14]
    $region57: #{tpu_custom_call.1} parent=1 // pred_fallthru
      _
    // Predicated region
    $region58: #{tpu_custom_call.1} parent=1 // pred_check
      _
    $region59: #{tpu_custom_call.1} parent=1 // pred_check_branch
      %567 = sbr.rel (0) target = $region61
    $region60: #{tpu_custom_call.1} parent=1 // pred_region
      %s569 = ssub.s32 128, 128
      %570 = vsyncadd [#allocation14], %s569
      %s572 = sshll.u32 [#allocation15], 4
      %s573 = int_to_ptr.vmem [resolvable:$true] %s572
      %575 = dma.vmem_to_hbm [thread:$0]  %s573, 128, %s10, [#allocation14]
    $region61: #{tpu_custom_call.1} parent=1 // pred_fallthru
      _
    // Predicated region
    $region62: #{tpu_custom_call.1} parent=1 // pred_check
      _
    $region63: #{tpu_custom_call.1} parent=1 // pred_check_branch
      %577 = sbr.rel (0) target = $region65
    $region64: #{tpu_custom_call.1} parent=1 // pred_region
      %578 = dma.done [#allocation8], 64
    $region65: #{tpu_custom_call.1} parent=1 // pred_fallthru
      _
    // Predicated region
    $region66: #{tpu_custom_call.1} parent=1 // pred_check
      _
    $region67: #{tpu_custom_call.1} parent=1 // pred_check_branch
      %580 = sbr.rel (0) target = $region69
    $region68: #{tpu_custom_call.1} parent=1 // pred_region
      %581 = dma.done [#allocation14], 64
    $region69: #{tpu_custom_call.1} parent=1 // pred_fallthru
      _
    // Predicated region
    $region70: #{tpu_custom_call.1} parent=1 // pred_check
      _
    $region71: #{tpu_custom_call.1} parent=1 // pred_check_branch
      %583 = sbr.rel (0) target = $region73
    $region72: #{tpu_custom_call.1} parent=1 // pred_region
      %584 = dma.done [#allocation14], 128
    $region73: #{tpu_custom_call.1} parent=1 // pred_fallthru
      _
    %585 = vsyncpa [#allocation7], 1
    %586 = vsyncpa [#allocation10], 1
    %587 = vsyncpa [#allocation8], 1
    %588 = vsyncpa [#allocation14], 1

</llo_original>
